<compile_context>
chip_gen: v7x
topology: tpu7x:2x2x1
jax: 0.10.0
libtpu: 0.0.40
codegen_flags: <defaults>
</compile_context>

<pallas_src>
import functools

import jax
import jax.numpy as jnp
import numpy as np
from jax import lax
from jax.experimental import pallas as pl
from jax.experimental.pallas import tpu as pltpu


def _spatial_attention_kernel(x_ref, w_ref, bs_ref, vs_ref, out_ref, *,
                              batch, n, t):
    # x_ref  : (batch*N, F*T) flattened batch block
    # w_ref  : (F*T, 2T) folded weight: [:, :T] folds W1&W2, [:, T:] folds W3
    # bs_ref : (N, N); vs_ref: (N, N)
    # out_ref: (N, batch*N) lane-stacked output slab (column block b = batch b)

    # One fused MXU matmul produces lhs and rhs rows for every (b, n).
    xw = jnp.dot(x_ref[...], w_ref[...],
                 preferred_element_type=jnp.float32)          # (batch*N, 2T)
    bs = bs_ref[...]                                          # (N, N)
    vs = vs_ref[...]                                          # (N, N)

    lhs_all = xw[:, :t]                                       # (batch*N, T)
    rhs_all = xw[:, t:]                                       # (batch*N, T)

    # product_b = lhs_b @ rhs_b^T  (transpose absorbed into the MXU feed).
    # For small batch blocks, one push on the full stacks + static diagonal
    # block extraction beats `batch` individual latency-bound sliver matmuls.
    if batch * n <= 256:
        prod_all = lax.dot_general(
            lhs_all, rhs_all, dimension_numbers=(((1,), (1,)), ((), ())),
            preferred_element_type=jnp.float32)               # (bN, bN)
        cols = [prod_all[b * n:(b + 1) * n, b * n:(b + 1) * n] + bs
                for b in range(batch)]
    else:
        cols = []
        for b in range(batch):
            prod = lax.dot_general(
                lhs_all[b * n:(b + 1) * n, :], rhs_all[b * n:(b + 1) * n, :],
                dimension_numbers=(((1,), (1,)), ((), ())),
                preferred_element_type=jnp.float32)           # (N, N)
            cols.append(prod + bs)

    # Lane-stacked slab: softmax is per-column and Vs acts from the left, so
    # stacking batches along lanes is exact and makes the tail lane-dense.
    slab = cols[0] if batch == 1 else jnp.concatenate(cols, axis=1)  # (N, bN)

    sig = jax.nn.sigmoid(slab)
    s = jnp.dot(vs, sig, preferred_element_type=jnp.float32)  # ONE MXU call

    # softmax over dim=1 of (B, N, N) == axis 0 of the slab (per column).
    m = jnp.max(s, axis=0, keepdims=True)
    e = jnp.exp(s - m)
    out_ref[...] = (e / jnp.sum(e, axis=0, keepdims=True)).astype(out_ref.dtype)


def fold_spatial_attention_weights(w1, w2, w3):
    """Fold W1/W2/W3 into one (F*T, 2T) MXU weight.  Hoist across calls."""
    F, T = w2.shape
    #   w12[f*T + t, t'] = W1[t] * W2[f, t']      (lhs = (x@W1)@W2)
    #   w3d[f*T + t, t'] = W3[f] * (t == t')      (rhs = W3@x)
    w12 = (w1[None, :, None] * w2[:, None, :]).reshape(F * T, T)
    w3d = (w3[:, None, None] *
           jnp.eye(T, dtype=w2.dtype)[None, :, :]).reshape(F * T, T)
    return jnp.concatenate([w12, w3d], axis=1)                # (F*T, 2T)


def _default_block_b(B, N, F, T, itemsize=4):
    def step_bytes(bb):
        # double-buffered input block + output slab per grid step
        return 2 * (bb * N * F * T + N * bb * N) * itemsize

    bb = B
    # Leave >= 2 grid steps for megacore once per-step work is non-trivial;
    # below that, a single step avoids the ~0.35 us per-step overhead.
    if B % 2 == 0 and step_bytes(B) > (256 << 10):
        bb = B // 2
    # Conservative VMEM budget (v7x: 64 MiB total, ~32 MiB scoped default).
    budget = 24 << 20
    while bb > 1 and (step_bytes(bb) > budget or B % bb != 0):
        bb -= 1
    return max(bb, 1)


def spatial_attention_pallas_folded(x, w_comb, bs, vs, block_b=None):
    B, N, F, T = x.shape
    bb = _default_block_b(B, N, F, T) if block_b is None else block_b
    assert B % bb == 0, "batch must be divisible by the batch block size"

    x_flat = x.reshape(B * N, F * T)                          # free reshape
    bs_2d = bs.reshape(N, N)

    # Raise the scoped-VMEM limit only when the estimated footprint needs it.
    est_vmem = (2 * (bb * N * F * T + N * bb * N) +
                F * T * 2 * T + 2 * N * N) * 4
    vmem_limit = (int(min(2 * est_vmem, 100 << 20))
                  if est_vmem > (24 << 20) else None)

    out_slab = pl.pallas_call(
        functools.partial(_spatial_attention_kernel, batch=bb, n=N, t=T),
        out_shape=jax.ShapeDtypeStruct((N, B * N), x.dtype),
        grid_spec=pltpu.PrefetchScalarGridSpec(
            num_scalar_prefetch=0,
            grid=(B // bb,),
            in_specs=[
                pl.BlockSpec((bb * N, F * T), lambda i: (i, 0)),
                pl.BlockSpec((F * T, 2 * T), lambda i: (0, 0)),
                pl.BlockSpec((N, N), lambda i: (0, 0)),
                pl.BlockSpec((N, N), lambda i: (0, 0)),
            ],
            out_specs=pl.BlockSpec((N, bb * N), lambda i: (0, i)),
        ),
        compiler_params=pltpu.CompilerParams(
            dimension_semantics=("parallel",),
            vmem_limit_bytes=vmem_limit),
    )(x_flat, w_comb, bs_2d, vs)

    # (N, B*N) lane-stacked slab -> (B, N, N); wrapper-side layout plumbing.
    return out_slab.reshape(N, B, N).transpose(1, 0, 2)


@functools.partial(jax.jit, static_argnames=("block_b",))
def spatial_attention_pallas(x, w1, w2, w3, bs, vs, block_b=None):
    w_comb = fold_spatial_attention_weights(w1, w2, w3)
    return spatial_attention_pallas_folded(x, w_comb, bs, vs, block_b=block_b)


def spatial_attention_ref(x, w1, w2, w3, bs, vs):
    # Pure-JAX reference matching the PyTorch forward exactly.
    lhs = jnp.matmul(jnp.matmul(x, w1), w2)            # (B, N, T)
    rhs = jnp.einsum('f,bnft->btn', w3, x)             # (B, T, N)
    product = jnp.matmul(lhs, rhs)                     # (B, N, N)
    s = jnp.matmul(vs, jax.nn.sigmoid(product + bs))   # (B, N, N)
    return jax.nn.softmax(s, axis=1)


if __name__ == "__main__":
    # Small, module-consistent shapes: B=2, N(num_of_vertices)=16,
    # F_in(in_channels)=4, T(num_of_timesteps)=8.
    B, N, F, T = 2, 16, 4, 8

    key = jax.random.PRNGKey(0)
    kx, k1, k2, k3, kb, kv = jax.random.split(key, 6)

    x = jax.random.normal(kx, (B, N, F, T), dtype=jnp.float32)
    # Deterministic synthetic parameter init (PyTorch leaves them uninitialized).
    W1 = jax.random.normal(k1, (T,), dtype=jnp.float32) * 0.1
    W2 = jax.random.normal(k2, (F, T), dtype=jnp.float32) * 0.1
    W3 = jax.random.normal(k3, (F,), dtype=jnp.float32) * 0.1
    bs = jax.random.normal(kb, (1, N, N), dtype=jnp.float32) * 0.1
    Vs = jax.random.normal(kv, (N, N), dtype=jnp.float32) * 0.1

    out = spatial_attention_pallas(x, W1, W2, W3, bs, Vs)
    out = jax.block_until_ready(out)

    ref = spatial_attention_ref(x, W1, W2, W3, bs, Vs)
    ref = jax.block_until_ready(ref)

    assert out.shape == (B, N, N)
    np.testing.assert_allclose(np.asarray(out), np.asarray(ref),
                               rtol=1e-5, atol=1e-5)
    print("KERNEL_OK")
</pallas_src>

<mosaic_0001>
module attributes {stable_mosaic.version = 11 : i64} {
  func.func @_spatial_attention_kernel(%arg0: i32, %arg1: memref<32x32xf32, #tpu.memory_space<vmem>>, %arg2: memref<32x16xf32, #tpu.memory_space<vmem>>, %arg3: memref<16x16xf32, #tpu.memory_space<vmem>>, %arg4: memref<16x16xf32, #tpu.memory_space<vmem>>, %arg5: memref<16x32xf32, #tpu.memory_space<vmem>>) attributes {dimension_semantics = [#tpu.dimension_semantics<parallel>], iteration_bounds = array<i64: 1>, scalar_prefetch = 0 : i64, scratch_operands = 0 : i64, tpu.core_type = #tpu.core_type<tc>, window_params = [{transform_indices = @transform_0, window_bounds = array<i64: 32, 32>}, {pipeline_mode = #tpu.pipeline_mode<synchronous>, transform_indices = @transform_1, window_bounds = array<i64: 32, 16>}, {pipeline_mode = #tpu.pipeline_mode<synchronous>, transform_indices = @transform_2, window_bounds = array<i64: 16, 16>}, {pipeline_mode = #tpu.pipeline_mode<synchronous>, transform_indices = @transform_3, window_bounds = array<i64: 16, 16>}, {transform_indices = @transform_4, window_bounds = array<i64: 16, 32>}]} {
    %c0 = arith.constant 0 : index
    %c0_0 = arith.constant 0 : index
    %0 = vector.load %arg1[%c0, %c0_0] : memref<32x32xf32, #tpu.memory_space<vmem>>, vector<32x32xf32>
    %c0_1 = arith.constant 0 : index
    %c0_2 = arith.constant 0 : index
    %1 = vector.load %arg2[%c0_1, %c0_2] : memref<32x16xf32, #tpu.memory_space<vmem>>, vector<32x16xf32>
    %cst = arith.constant dense<0.000000e+00> : vector<32x16xf32>
    %2 = tpu.matmul %0, %1, %cst {dimension_numbers = #tpu.dot_dimension_numbers<[1], [0], [0], [1], [0, 0, 1, 1], [], []>} : vector<32x32xf32>, vector<32x16xf32>, vector<32x16xf32> -> vector<32x16xf32>
    %c0_3 = arith.constant 0 : index
    %c0_4 = arith.constant 0 : index
    %3 = vector.load %arg3[%c0_3, %c0_4] : memref<16x16xf32, #tpu.memory_space<vmem>>, vector<16x16xf32>
    %c0_5 = arith.constant 0 : index
    %c0_6 = arith.constant 0 : index
    %4 = vector.load %arg4[%c0_5, %c0_6] : memref<16x16xf32, #tpu.memory_space<vmem>>, vector<16x16xf32>
    %5 = vector.extract_strided_slice %2 {offsets = [0, 0], sizes = [32, 8], strides = [1, 1]} : vector<32x16xf32> to vector<32x8xf32>
    %6 = vector.extract_strided_slice %2 {offsets = [0, 8], sizes = [32, 8], strides = [1, 1]} : vector<32x16xf32> to vector<32x8xf32>
    %cst_7 = arith.constant dense<0.000000e+00> : vector<32x32xf32>
    %7 = tpu.matmul %5, %6, %cst_7 {dimension_numbers = #tpu.dot_dimension_numbers<[1], [1], [0], [0], [0, 0, 1, 0], [], []>} : vector<32x8xf32>, vector<32x8xf32>, vector<32x32xf32> -> vector<32x32xf32>
    %8 = vector.extract_strided_slice %7 {offsets = [0, 0], sizes = [16, 16], strides = [1, 1]} : vector<32x32xf32> to vector<16x16xf32>
    %9 = arith.addf %8, %3 : vector<16x16xf32>
    %10 = vector.extract_strided_slice %7 {offsets = [16, 16], sizes = [16, 16], strides = [1, 1]} : vector<32x32xf32> to vector<16x16xf32>
    %11 = arith.addf %10, %3 : vector<16x16xf32>
    %12 = tpu.concatenate %9, %11 in 1 : vector<16x16xf32>, vector<16x16xf32> -> vector<16x32xf32>
    %13 = arith.negf %12 : vector<16x32xf32>
    %14 = math.exp %13 : vector<16x32xf32>
    %cst_8 = arith.constant 1.000000e+00 : f32
    %15 = vector.broadcast %cst_8 : f32 to vector<16x32xf32>
    %16 = arith.addf %15, %14 : vector<16x32xf32>
    %17 = arith.divf %15, %16 : vector<16x32xf32>
    %cst_9 = arith.constant dense<0.000000e+00> : vector<16x32xf32>
    %18 = tpu.matmul %4, %17, %cst_9 {dimension_numbers = #tpu.dot_dimension_numbers<[1], [0], [0], [1], [0, 0, 1, 1], [], []>} : vector<16x16xf32>, vector<16x32xf32>, vector<16x32xf32> -> vector<16x32xf32>
    %cst_10 = arith.constant dense<0xFF800000> : vector<32xf32>
    %19 = vector.multi_reduction <maximumf>, %18, %cst_10 [0] : vector<16x32xf32> to vector<32xf32>
    %20 = vector.shape_cast %19 : vector<32xf32> to vector<1x32xf32>
    %21 = vector.broadcast %20 : vector<1x32xf32> to vector<16x32xf32>
    %22 = arith.subf %18, %21 : vector<16x32xf32>
    %23 = math.exp %22 : vector<16x32xf32>
    %cst_11 = arith.constant dense<0.000000e+00> : vector<32xf32>
    %24 = vector.multi_reduction <add>, %23, %cst_11 [0] : vector<16x32xf32> to vector<32xf32>
    %25 = vector.shape_cast %24 : vector<32xf32> to vector<1x32xf32>
    %26 = vector.broadcast %25 : vector<1x32xf32> to vector<16x32xf32>
    %27 = arith.divf %23, %26 : vector<16x32xf32>
    %c0_12 = arith.constant 0 : index
    %c0_13 = arith.constant 0 : index
    %28 = vector.load %arg5[%c0_12, %c0_13] : memref<16x32xf32, #tpu.memory_space<vmem>>, vector<16x32xf32>
    tpu.vector_store %arg5[%c0_12, %c0_13], %27 {strides = array<i32>} : memref<16x32xf32, #tpu.memory_space<vmem>>, vector<16x32xf32>,
    return
  }
  func.func @transform_0(%arg0: i32) -> (i32, i32) {
    %c0_i32 = arith.constant 0 : i32
    %c0_i32_0 = arith.constant 0 : i32
    return %arg0, %c0_i32 : i32, i32
  }
  func.func @transform_1(%arg0: i32) -> (i32, i32) {
    %c0_i32 = arith.constant 0 : i32
    %c0_i32_0 = arith.constant 0 : i32
    %c0_i32_1 = arith.constant 0 : i32
    return %c0_i32, %c0_i32_0 : i32, i32
  }
  func.func @transform_2(%arg0: i32) -> (i32, i32) {
    %c0_i32 = arith.constant 0 : i32
    %c0_i32_0 = arith.constant 0 : i32
    %c0_i32_1 = arith.constant 0 : i32
    return %c0_i32, %c0_i32_0 : i32, i32
  }
  func.func @transform_3(%arg0: i32) -> (i32, i32) {
    %c0_i32 = arith.constant 0 : i32
    %c0_i32_0 = arith.constant 0 : i32
    %c0_i32_1 = arith.constant 0 : i32
    return %c0_i32, %c0_i32_0 : i32, i32
  }
  func.func @transform_4(%arg0: i32) -> (i32, i32) {
    %c0_i32 = arith.constant 0 : i32
    %c0_i32_0 = arith.constant 0 : i32
    return %c0_i32, %arg0 : i32, i32
  }
}

</mosaic_0001>

<llo_original>
// kernel: spatial_attention_pallas.1
$region0: #{spatial_attention_pallas.1}
  #allocation0 [shape = 'u32[]', space=smem, size = 0x4, offset = 0x4, fixed_abs, tag = 'smem constant byte address 0x4 - core index']
  #allocation1 [shape = 'u32[144,128]{1,0:T(1,128)}', space=vmem, size = 0x12000, scoped, tag = 'internal scratch']
  %s0 = inlined_call_operand.vmem [shape: f32[32,32], index: 0, kind: input, shape index: {}]
  %s1 = inlined_call_operand.vmem [shape: f32[32,16], index: 1, kind: input, shape index: {}]
  %s2 = inlined_call_operand.vmem [shape: f32[16,16], index: 2, kind: input, shape index: {}]
  %s3 = inlined_call_operand.vmem [shape: f32[16,16], index: 3, kind: input, shape index: {}]
  %s4 = inlined_call_operand.vmem [shape: f32[16,32], index: 4, kind: output, shape index: {}]
  %s5 = sld [smem:[#allocation0]]
  $region26: #{spatial_attention_pallas.1} parent=0
    _
  %s7 = ssub.s32 1, %s5
  %s8 = scalar_select 0, %s7, %s5
  // Predicated region
  $region2: #{spatial_attention_pallas.1} parent=0 // pred_check
    _
  $region3: #{spatial_attention_pallas.1} parent=0 // pred_check_branch
    %10 = sbr.rel (0) target = $region5
  $region4: #{spatial_attention_pallas.1} parent=0 // pred_region
    _
  $region5: #{spatial_attention_pallas.1} parent=0 // pred_fallthru
    _
  // Predicated region
  $region6: #{spatial_attention_pallas.1} parent=0 // pred_check
    _
  $region7: #{spatial_attention_pallas.1} parent=0 // pred_check_branch
    %12 = sbr.rel (0) target = $region9
  $region8: #{spatial_attention_pallas.1} parent=0 // pred_region
    _
  $region9: #{spatial_attention_pallas.1} parent=0 // pred_fallthru
    _
  // Predicated region
  $region10: #{spatial_attention_pallas.1} parent=0 // pred_check
    _
  $region11: #{spatial_attention_pallas.1} parent=0 // pred_check_branch
    %14 = sbr.rel (0) target = $region13
  $region12: #{spatial_attention_pallas.1} parent=0 // pred_region
    _
  $region13: #{spatial_attention_pallas.1} parent=0 // pred_fallthru
    _
  // Predicated region
  $region14: #{spatial_attention_pallas.1} parent=0 // pred_check
    _
  $region15: #{spatial_attention_pallas.1} parent=0 // pred_check_branch
    %16 = sbr.rel (0) target = $region17
  $region16: #{spatial_attention_pallas.1} parent=0 // pred_region
    _
  $region17: #{spatial_attention_pallas.1} parent=0 // pred_fallthru
    _
  %v17 = vld [vmem:[%s0] sm:$0xff]
  %v18 = vld [vmem:[%s0 + $0x8] sm:$0xff]
  %v19 = vld [vmem:[%s0 + $0x10] sm:$0xff]
  %v20 = vld [vmem:[%s0 + $0x18] sm:$0xff]
  %v21 = vld [vmem:[%s1] sm:$0xff]
  %v22 = vld [vmem:[%s1 + $0x8] sm:$0xff]
  %v23 = vld [vmem:[%s1 + $0x10] sm:$0xff]
  %v24 = vld [vmem:[%s1 + $0x18] sm:$0xff]
  %vm25 = vcmask 261120
  %v27 = vsel %vm25, %v17, 0
  %v30 = vsel %vm25, %v18, 0
  %v33 = vsel %vm25, %v19, 0
  %v36 = vsel %vm25, %v20, 0
  %38 = vmatprep.subr.mxu0 0.0
  %39 = vmatpush1.msra.mxu0 %v21
  %40 = vmatprep.subr.mxu0 0.0
  %41 = vmatpush1.msra.mxu0 %v22
  %42 = vmatprep.subr.mxu0 0.0
  %43 = vmatpush1.msra.mxu0 %v23
  %44 = vmatprep.subr.mxu0 0.0
  %45 = vmatpush1.msra.mxu0 %v24
  %46 = vmatprep.subr.mxu0 0.0
  %47 = vmatpush1.msra.mxu0 0.0
  %48 = vmatprep.subr.mxu0 0.0
  %49 = vmatpush1.msra.mxu0 0.0
  %50 = vmatprep.subr.mxu0 0.0
  %51 = vmatpush1.msra.mxu0 0.0
  %52 = vmatprep.subr.mxu0 0.0
  %53 = vmatpush1.msra.mxu0 0.0
  %54 = vmatprep.subr.mxu0 0.0
  %55 = vmatpush1.msra.mxu0 0.0
  %56 = vmatprep.subr.mxu0 0.0
  %57 = vmatpush1.msra.mxu0 0.0
  %58 = vmatprep.subr.mxu0 0.0
  %59 = vmatpush1.msra.mxu0 0.0
  %60 = vmatprep.subr.mxu0 0.0
  %61 = vmatpush1.msra.mxu0 0.0
  %62 = vmatprep.subr.mxu0 0.0
  %63 = vmatpush1.msra.mxu0 0.0
  %64 = vmatprep.subr.mxu0 0.0
  %65 = vmatpush1.msra.mxu0 0.0
  %66 = vmatprep.subr.mxu0 0.0
  %67 = vmatpush1.msra.mxu0 0.0
  %68 = vmatprep.subr.mxu0 0.0
  %69 = vmatpush1.msra.mxu0 0.0
  %70 = vmatprep.subr.mxu0 0.0
  %71 = vmatpush1.msra.mxu0 0.0
  %72 = vmatprep.subr.mxu0 0.0
  %73 = vmatpush1.msra.mxu0 0.0
  %74 = vmatprep.subr.mxu0 0.0
  %75 = vmatpush1.msra.mxu0 0.0
  %76 = vmatprep.subr.mxu0 0.0
  %77 = vmatpush1.msra.mxu0 0.0
  %78 = vmatprep.subr.mxu0 0.0
  %79 = vmatpush1.msra.mxu0 0.0
  %80 = vmatprep.subr.mxu0 0.0
  %81 = vmatpush1.msra.mxu0 0.0
  %82 = vmatprep.subr.mxu0 0.0
  %83 = vmatpush1.msra.mxu0 0.0
  %84 = vmatprep.subr.mxu0 0.0
  %85 = vmatpush1.msra.mxu0 0.0
  %86 = vmatprep.subr.mxu0 0.0
  %87 = vmatpush1.msra.mxu0 0.0
  %88 = vmatprep.subr.mxu0 0.0
  %89 = vmatpush1.msra.mxu0 0.0
  %90 = vmatprep.subr.mxu0 0.0
  %91 = vmatpush1.msra.mxu0 0.0
  %92 = vmatprep.subr.mxu0 0.0
  %93 = vmatpush1.msra.mxu0 0.0
  %94 = vmatprep.subr.mxu0 0.0
  %95 = vmatpush1.msra.mxu0 0.0
  %96 = vmatprep.subr.mxu0 0.0
  %97 = vmatpush1.msra.mxu0 0.0
  %98 = vmatprep.subr.mxu0 0.0
  %99 = vmatpush1.msra.mxu0 0.0
  %100 = vmatprep.subr.mxu0 0.0
  %101 = vmatpush1.msra.mxu0 0.0
  %102 = vmatprep.mubr.f32.mxu0 0.0
  %103 = vmatmul.mubr.f32.gmra.mrb[0].mxu0 %v27
  %v104 = vpop.f32.mrb[0].mxu0
  %v105 = vadd.f32 0.0, %v104
  %v106 = vpop.f32.mrb[0].mxu0
  %107 = vmatprep.mubr.f32.mxu0 0.0
  %108 = vmatmul.mubr.f32.gmra.mrb[0].mxu0 %v30
  %v109 = vpop.f32.mrb[0].mxu0
  %v110 = vadd.f32 0.0, %v109
  %v111 = vpop.f32.mrb[0].mxu0
  %112 = vmatprep.mubr.f32.mxu0 0.0
  %113 = vmatmul.mubr.f32.gmra.mrb[0].mxu0 %v33
  %v114 = vpop.f32.mrb[0].mxu0
  %v115 = vadd.f32 0.0, %v114
  %v116 = vpop.f32.mrb[0].mxu0
  %117 = vmatprep.mubr.f32.mxu0 0.0
  %118 = vmatmul.mubr.f32.gmra.mrb[0].mxu0 %v36
  %v119 = vpop.f32.mrb[0].mxu0
  %v120 = vadd.f32 0.0, %v119
  %v121 = vpop.f32.mrb[0].mxu0
  %122 = vdwg.mxu0
  %v123 = vld [vmem:[%s2] sm:$0xff]
  %v124 = vld [vmem:[%s2 + $0x8] sm:$0xff]
  %v125 = vld [vmem:[%s3] sm:$0xff]
  %v126 = vld [vmem:[%s3 + $0x8] sm:$0xff]
  %131 = vrot.lane.b32.xlu0 %v105, 120
  %v132 = vpop.permute.xlu0 %131
  %133 = vrot.lane.b32.xlu0 %v110, 120
  %v134 = vpop.permute.xlu0 %133
  %135 = vrot.lane.b32.xlu0 %v115, 120
  %v136 = vpop.permute.xlu0 %135
  %137 = vrot.lane.b32.xlu0 %v120, 120
  %v138 = vpop.permute.xlu0 %137
  %vm139 = vcmask 64512
  %v140 = vsel %vm139, %v105, 0
  %v142 = vsel %vm139, %v110, 0
  %v144 = vsel %vm139, %v115, 0
  %v146 = vsel %vm139, %v120, 0
  %v148 = vsel %vm139, %v132, 0
  %v150 = vsel %vm139, %v134, 0
  %v152 = vsel %vm139, %v136, 0
  %v154 = vsel %vm139, %v138, 0
  %156 = vmatprep.subr.mxu0 0.0
  %157 = vmatpush1.xpose.msra.mxu0 %v148
  %158 = vmatprep.subr.mxu0 0.0
  %159 = vmatpush1.xpose.msra.mxu0 %v150
  %160 = vmatprep.subr.mxu0 0.0
  %161 = vmatpush1.xpose.msra.mxu0 %v152
  %162 = vmatprep.subr.mxu0 0.0
  %163 = vmatpush1.xpose.msra.mxu0 %v154
  %164 = vmatprep.subr.mxu0 0.0
  %165 = vmatpush1.xpose.msra.mxu0 0.0
  %166 = vmatprep.subr.mxu0 0.0
  %167 = vmatpush1.xpose.msra.mxu0 0.0
  %168 = vmatprep.subr.mxu0 0.0
  %169 = vmatpush1.xpose.msra.mxu0 0.0
  %170 = vmatprep.subr.mxu0 0.0
  %171 = vmatpush1.xpose.msra.mxu0 0.0
  %172 = vmatprep.subr.mxu0 0.0
  %173 = vmatpush1.xpose.msra.mxu0 0.0
  %174 = vmatprep.subr.mxu0 0.0
  %175 = vmatpush1.xpose.msra.mxu0 0.0
  %176 = vmatprep.subr.mxu0 0.0
  %177 = vmatpush1.xpose.msra.mxu0 0.0
  %178 = vmatprep.subr.mxu0 0.0
  %179 = vmatpush1.xpose.msra.mxu0 0.0
  %180 = vmatprep.subr.mxu0 0.0
  %181 = vmatpush1.xpose.msra.mxu0 0.0
  %182 = vmatprep.subr.mxu0 0.0
  %183 = vmatpush1.xpose.msra.mxu0 0.0
  %184 = vmatprep.subr.mxu0 0.0
  %185 = vmatpush1.xpose.msra.mxu0 0.0
  %186 = vmatprep.subr.mxu0 0.0
  %187 = vmatpush1.xpose.msra.mxu0 0.0
  %188 = vmatprep.subr.mxu0 0.0
  %189 = vmatpush1.xpose.msra.mxu0 0.0
  %190 = vmatprep.subr.mxu0 0.0
  %191 = vmatpush1.xpose.msra.mxu0 0.0
  %192 = vmatprep.subr.mxu0 0.0
  %193 = vmatpush1.xpose.msra.mxu0 0.0
  %194 = vmatprep.subr.mxu0 0.0
  %195 = vmatpush1.xpose.msra.mxu0 0.0
  %196 = vmatprep.subr.mxu0 0.0
  %197 = vmatpush1.xpose.msra.mxu0 0.0
  %198 = vmatprep.subr.mxu0 0.0
  %199 = vmatpush1.xpose.msra.mxu0 0.0
  %200 = vmatprep.subr.mxu0 0.0
  %201 = vmatpush1.xpose.msra.mxu0 0.0
  %202 = vmatprep.subr.mxu0 0.0
  %203 = vmatpush1.xpose.msra.mxu0 0.0
  %204 = vmatprep.subr.mxu0 0.0
  %205 = vmatpush1.xpose.msra.mxu0 0.0
  %206 = vmatprep.subr.mxu0 0.0
  %207 = vmatpush1.xpose.msra.mxu0 0.0
  %208 = vmatprep.subr.mxu0 0.0
  %209 = vmatpush1.xpose.msra.mxu0 0.0
  %210 = vmatprep.subr.mxu0 0.0
  %211 = vmatpush1.xpose.msra.mxu0 0.0
  %212 = vmatprep.subr.mxu0 0.0
  %213 = vmatpush1.xpose.msra.mxu0 0.0
  %214 = vmatprep.subr.mxu0 0.0
  %215 = vmatpush1.xpose.msra.mxu0 0.0
  %216 = vmatprep.subr.mxu0 0.0
  %217 = vmatpush1.xpose.msra.mxu0 0.0
  %218 = vmatprep.subr.mxu0 0.0
  %219 = vmatpush1.xpose.msra.mxu0 0.0
  %220 = vmatprep.mubr.f32.mxu0 0.0
  %221 = vmatmul.mubr.f32.gmra.mrb[0].mxu0 %v140
  %v222 = vpop.f32.mrb[0].mxu0
  %v223 = vadd.f32 0.0, %v222
  %v224 = vpop.f32.mrb[0].mxu0
  %225 = vmatprep.mubr.f32.mxu0 0.0
  %226 = vmatmul.mubr.f32.gmra.mrb[0].mxu0 %v142
  %v227 = vpop.f32.mrb[0].mxu0
  %v228 = vadd.f32 0.0, %v227
  %v229 = vpop.f32.mrb[0].mxu0
  %230 = vmatprep.mubr.f32.mxu0 0.0
  %231 = vmatmul.mubr.f32.gmra.mrb[0].mxu0 %v144
  %v232 = vpop.f32.mrb[0].mxu0
  %v233 = vadd.f32 0.0, %v232
  %v234 = vpop.f32.mrb[0].mxu0
  %235 = vmatprep.mubr.f32.mxu0 0.0
  %236 = vmatmul.mubr.f32.gmra.mrb[0].mxu0 %v146
  %v237 = vpop.f32.mrb[0].mxu0
  %v238 = vadd.f32 0.0, %v237
  %v239 = vpop.f32.mrb[0].mxu0
  %240 = vdwg.mxu0
  %v241 = vadd.f32 %v223, %v123
  %v242 = vadd.f32 %v228, %v124
  %245 = vrot.lane.b32.xlu0 %v123, 16
  %v246 = vpop.permute.xlu0 %245
  %247 = vrot.lane.b32.xlu0 %v124, 16
  %v248 = vpop.permute.xlu0 %247
  %v251 = vadd.f32 %v233, %v246
  %v252 = vadd.f32 %v238, %v248
  %vm253 = vcmask 130048
  %v254 = vsel %vm253, %v241, %v251
  %v255 = vsel %vm253, %v242, %v252
  %v256 = vxor.u32 %v254, 2147483648
  %v257 = vxor.u32 %v255, 2147483648
  %v258 = vmul.f32 %v256, 1.442695
  %v259 = vpow.pop %v258
  %v260 = vmul.f32 %v257, 1.442695
  %v261 = vpow.pop %v260
  %v262 = vadd.f32 %v259, 1.0
  %v263 = vadd.f32 %v261, 1.0
  %v264 = vrcp.pop %v262
  %v265 = vmul.f32 1.0, %v264
  %v266 = vrcp.pop %v263
  %v267 = vmul.f32 1.0, %v266
  %v269 = vsel %vm253, %v125, 0
  %v272 = vsel %vm253, %v126, 0
  %274 = vmatprep.subr.mxu0 0.0
  %275 = vmatpush1.msra.mxu0 %v265
  %276 = vmatprep.subr.mxu0 0.0
  %277 = vmatpush1.msra.mxu0 %v267
  %278 = vmatprep.subr.mxu0 0.0
  %279 = vmatpush1.msra.mxu0 0.0
  %280 = vmatprep.subr.mxu0 0.0
  %281 = vmatpush1.msra.mxu0 0.0
  %282 = vmatprep.subr.mxu0 0.0
  %283 = vmatpush1.msra.mxu0 0.0
  %284 = vmatprep.subr.mxu0 0.0
  %285 = vmatpush1.msra.mxu0 0.0
  %286 = vmatprep.subr.mxu0 0.0
  %287 = vmatpush1.msra.mxu0 0.0
  %288 = vmatprep.subr.mxu0 0.0
  %289 = vmatpush1.msra.mxu0 0.0
  %290 = vmatprep.subr.mxu0 0.0
  %291 = vmatpush1.msra.mxu0 0.0
  %292 = vmatprep.subr.mxu0 0.0
  %293 = vmatpush1.msra.mxu0 0.0
  %294 = vmatprep.subr.mxu0 0.0
  %295 = vmatpush1.msra.mxu0 0.0
  %296 = vmatprep.subr.mxu0 0.0
  %297 = vmatpush1.msra.mxu0 0.0
  %298 = vmatprep.subr.mxu0 0.0
  %299 = vmatpush1.msra.mxu0 0.0
  %300 = vmatprep.subr.mxu0 0.0
  %301 = vmatpush1.msra.mxu0 0.0
  %302 = vmatprep.subr.mxu0 0.0
  %303 = vmatpush1.msra.mxu0 0.0
  %304 = vmatprep.subr.mxu0 0.0
  %305 = vmatpush1.msra.mxu0 0.0
  %306 = vmatprep.subr.mxu0 0.0
  %307 = vmatpush1.msra.mxu0 0.0
  %308 = vmatprep.subr.mxu0 0.0
  %309 = vmatpush1.msra.mxu0 0.0
  %310 = vmatprep.subr.mxu0 0.0
  %311 = vmatpush1.msra.mxu0 0.0
  %312 = vmatprep.subr.mxu0 0.0
  %313 = vmatpush1.msra.mxu0 0.0
  %314 = vmatprep.subr.mxu0 0.0
  %315 = vmatpush1.msra.mxu0 0.0
  %316 = vmatprep.subr.mxu0 0.0
  %317 = vmatpush1.msra.mxu0 0.0
  %318 = vmatprep.subr.mxu0 0.0
  %319 = vmatpush1.msra.mxu0 0.0
  %320 = vmatprep.subr.mxu0 0.0
  %321 = vmatpush1.msra.mxu0 0.0
  %322 = vmatprep.subr.mxu0 0.0
  %323 = vmatpush1.msra.mxu0 0.0
  %324 = vmatprep.subr.mxu0 0.0
  %325 = vmatpush1.msra.mxu0 0.0
  %326 = vmatprep.subr.mxu0 0.0
  %327 = vmatpush1.msra.mxu0 0.0
  %328 = vmatprep.subr.mxu0 0.0
  %329 = vmatpush1.msra.mxu0 0.0
  %330 = vmatprep.subr.mxu0 0.0
  %331 = vmatpush1.msra.mxu0 0.0
  %332 = vmatprep.subr.mxu0 0.0
  %333 = vmatpush1.msra.mxu0 0.0
  %334 = vmatprep.subr.mxu0 0.0
  %335 = vmatpush1.msra.mxu0 0.0
  %336 = vmatprep.subr.mxu0 0.0
  %337 = vmatpush1.msra.mxu0 0.0
  %338 = vmatprep.mubr.f32.mxu0 0.0
  %339 = vmatmul.mubr.f32.gmra.mrb[0].mxu0 %v269
  %v340 = vpop.f32.mrb[0].mxu0
  %v341 = vadd.f32 0.0, %v340
  %v342 = vpop.f32.mrb[0].mxu0
  %343 = vmatprep.mubr.f32.mxu0 0.0
  %344 = vmatmul.mubr.f32.gmra.mrb[0].mxu0 %v272
  %v345 = vpop.f32.mrb[0].mxu0
  %v346 = vadd.f32 0.0, %v345
  %v347 = vpop.f32.mrb[0].mxu0
  %348 = vdwg.mxu0
  %v349 = vsel %vm25, %v341, -inf
  %v350 = vsel %vm25, %v346, -inf
  %v351 = vmax.f32 %v349, %v350
  %v352 = vrot.slane %v351, 4
  %v353 = vmax.f32 %v351, %v352
  %v354 = vrot.slane %v353, 2
  %v355 = vmax.f32 %v353, %v354
  %v356 = vrot.slane %v355, 1
  %v357 = vmax.f32 %v355, %v356
  %v358 = vsub.f32 %v341, %v357
  %v359 = vsub.f32 %v346, %v357
  %v360 = vmul.f32 %v358, 1.442695
  %v361 = vpow.pop %v360
  %v362 = vmul.f32 %v359, 1.442695
  %v363 = vpow.pop %v362
  %v364 = vsel %vm25, %v361, 0.0
  %v365 = vsel %vm25, %v363, 0.0
  %v366 = vadd.f32 %v364, %v365
  %v367 = vrot.slane %v366, 4
  %v368 = vadd.f32 %v366, %v367
  %v369 = vrot.slane %v368, 2
  %v370 = vadd.f32 %v368, %v369
  %v371 = vrot.slane %v370, 1
  %v372 = vadd.f32 %v370, %v371
  %v373 = vrcp.pop %v372
  %v374 = vmul.f32 %v361, %v373
  %v375 = vmul.f32 %v363, %v373
  %376 = vst.msk [vmem:[%s4] sm:$0xff] %vm25, %v374
  %377 = vst.msk [vmem:[%s4 + $0x8] sm:$0xff] %vm25, %v375
  // Predicated region
  $region18: #{spatial_attention_pallas.1} parent=0 // pred_check
    _
  $region19: #{spatial_attention_pallas.1} parent=0 // pred_check_branch
    %379 = sbr.rel (0) target = $region21
  $region20: #{spatial_attention_pallas.1} parent=0 // pred_region
    _
  $region21: #{spatial_attention_pallas.1} parent=0 // pred_fallthru
    _
  // Predicated region
  $region22: #{spatial_attention_pallas.1} parent=0 // pred_check
    _
  $region23: #{spatial_attention_pallas.1} parent=0 // pred_check_branch
    %381 = sbr.rel (0) target = $region25
  $region24: #{spatial_attention_pallas.1} parent=0 // pred_region
    _
  $region25: #{spatial_attention_pallas.1} parent=0 // pred_fallthru
    _

</llo_original>
